<compile_context>
chip_gen: v6e
topology: v6e:2x2x1
jax: 0.10.0
libtpu: 0.0.40
codegen_flags: <defaults>
</compile_context>

<pallas_src>
import functools

import jax
import jax.numpy as jnp
from jax.experimental import pallas as pl
from jax.experimental.pallas import tpu as pltpu

LANE = 128
NEG_INF = -1e30  # masks padded class columns out of the softmax


# ---------------------------------------------------------------------------
# Fused kernel: fc0+ReLU  ->  nlayers x nof-layer  ->  fc1+log_softmax
# Grid = (nlayers,), sequential ("arbitrary").  h / h0 live in VMEM scratch.
# ---------------------------------------------------------------------------
def fused_nof_kernel(x_ref, adj_ref, w0_ref, b0_ref, wc_ref, w1_ref, b1_ref,
                     out_ref, h_ref, h0_ref, *, alpha, hop, nlayers):
    layer = pl.program_id(0)

    # ---- layer 0: fc0 + ReLU (computed once, kept resident) ----------------
    @pl.when(layer == 0)
    def _():
        h0 = jnp.dot(x_ref[...], w0_ref[...], preferred_element_type=jnp.float32)
        h0 = jnp.maximum(h0 + b0_ref[...], 0.0)
        h0_ref[...] = h0
        h_ref[...] = h0

    # ---- nof layer (GCNII-style approximation, see TODO at top) ------------
    adj = adj_ref[...]                       # bf16, resident across all layers
    hi = h_ref[...]                          # f32 carry from previous layer
    for _ in range(hop):                     # static small trip-count, unrolled
        hi = jnp.dot(adj, hi.astype(adj.dtype), preferred_element_type=jnp.float32)
    support = (1.0 - alpha) * hi + alpha * h0_ref[...]          # f32 elementwise
    h_new = jnp.dot(support.astype(wc_ref.dtype), wc_ref[...],
                    preferred_element_type=jnp.float32)
    h_new = jnp.maximum(h_new, 0.0)          # act_fn = ReLU
    h_ref[...] = h_new

    # ---- last layer: fc1 + log_softmax, single lane-dense (N, 128) store ---
    @pl.when(layer == nlayers - 1)
    def _():
        y = jnp.dot(h_new.astype(w1_ref.dtype), w1_ref[...],
                    preferred_element_type=jnp.float32) + b1_ref[...]
        # padded class columns carry a -1e30 bias -> exp underflows to 0 exactly,
        # so reducing over the full 128-lane slab is exact and stays full-lane.
        m = jnp.max(y, axis=1, keepdims=True)
        z = y - m
        lse = jnp.log(jnp.sum(jnp.exp(z), axis=1, keepdims=True))
        out_ref[...] = z - lse


# ---------------------------------------------------------------------------
# Wrapper: pad to lane-dense widths, cast MXU inputs to bf16, one pallas_call.
# ---------------------------------------------------------------------------
def _pad2(a, rows, cols, fill=0.0):
    return jnp.pad(a, ((0, rows - a.shape[0]), (0, cols - a.shape[1])),
                   constant_values=fill)


def _round_up(n, m):
    return ((n + m - 1) // m) * m


def nof_forward(x, adj, params, *, nlayers, alpha, hop, nclass):
    assert nlayers >= 1
    N, F = x.shape
    H = params["fc0_w"].shape[1]
    Hp = _round_up(H, LANE)
    Cp = _round_up(nclass, LANE)

    # Pad weights to lane-dense last dims (zeros keep the math exact; padded
    # hidden columns stay 0 through ReLU, so padded rows of later weights are
    # multiplied by zeros).  b1 padding uses -1e30 to mask softmax columns.
    w0 = _pad2(params["fc0_w"], F, Hp).astype(jnp.bfloat16)
    b0 = _pad2(params["fc0_b"], 1, Hp)                                   # f32
    wc = _pad2(params["conv0_w"], Hp, Hp).astype(jnp.bfloat16)
    w1 = _pad2(params["fc1_w"], Hp, Cp).astype(jnp.bfloat16)
    b1 = _pad2(params["fc1_b"], 1, Cp, fill=NEG_INF)                     # f32

    x_bf = x.astype(jnp.bfloat16)
    adj_bf = adj.astype(jnp.bfloat16)

    flops = (2 * N * F * Hp
             + nlayers * (hop * 2 * N * N * Hp + 2 * N * Hp * Hp)
             + 2 * N * Hp * Cp)
    bytes_accessed = (2 * (x_bf.size + adj_bf.size + w0.size + wc.size + w1.size)
                      + 4 * (b0.size + b1.size + N * Cp))
    cost = pl.CostEstimate(flops=flops, transcendentals=N * Cp + N,
                           bytes_accessed=bytes_accessed)

    kernel = functools.partial(fused_nof_kernel, alpha=alpha, hop=hop,
                               nlayers=nlayers)
    out_pad = pl.pallas_call(
        kernel,
        out_shape=jax.ShapeDtypeStruct((N, Cp), jnp.float32),
        grid_spec=pltpu.PrefetchScalarGridSpec(
            num_scalar_prefetch=0,
            grid=(nlayers,),
            in_specs=[
                pl.BlockSpec((N, F), lambda l: (0, 0)),    # x      (resident)
                pl.BlockSpec((N, N), lambda l: (0, 0)),    # adj    (resident)
                pl.BlockSpec((F, Hp), lambda l: (0, 0)),   # W0     (resident)
                pl.BlockSpec((1, Hp), lambda l: (0, 0)),   # b0     (resident)
                pl.BlockSpec((Hp, Hp), lambda l: (0, 0)),  # W_conv (resident)
                pl.BlockSpec((Hp, Cp), lambda l: (0, 0)),  # W1     (resident)
                pl.BlockSpec((1, Cp), lambda l: (0, 0)),   # b1     (resident)
            ],
            out_specs=pl.BlockSpec((N, Cp), lambda l: (0, 0)),
            scratch_shapes=[
                pltpu.VMEM((N, Hp), jnp.float32),   # h   (layer carry)
                pltpu.VMEM((N, Hp), jnp.float32),   # h0  (= relu(fc0(x)))
            ],
        ),
        compiler_params=pltpu.CompilerParams(
            dimension_semantics=("arbitrary",),     # layer axis carries state
            vmem_limit_bytes=32 * 1024 * 1024,      # safe on v5e/v6e/v7x
        ),
        cost_estimate=cost,
    )(x_bf, adj_bf, w0, b0, wc, w1, b1)

    return out_pad[:, :nclass]


# ---------------------------------------------------------------------------
# Pure-JAX f32 reference (same approximation) for correctness checking.
# ---------------------------------------------------------------------------
def nof_forward_ref(x, adj, params, *, nlayers, alpha, hop):
    h = jnp.maximum(x @ params["fc0_w"] + params["fc0_b"], 0.0)
    h0 = h
    for _ in range(nlayers):
        hi = h
        for _ in range(hop):
            hi = adj @ hi
        support = (1.0 - alpha) * hi + alpha * h0
        h = jnp.maximum(support @ params["conv0_w"], 0.0)
    y = h @ params["fc1_w"] + params["fc1_b"]
    return jax.nn.log_softmax(y, axis=1)


# ---------------------------------------------------------------------------
# Parameter / graph construction.
# ---------------------------------------------------------------------------
def init_params(key, nfeat, nhidden, nclass):
    k0, k1, k2, k3, k4 = jax.random.split(key, 5)
    scale0 = 1.0 / jnp.sqrt(nfeat)
    scale1 = 1.0 / jnp.sqrt(nhidden)
    return {
        # Linear weights stored as [in, out] (transposed vs torch's [out, in]).
        "fc0_w": jax.random.uniform(k0, (nfeat, nhidden), jnp.float32, -scale0, scale0),
        "fc0_b": jax.random.uniform(k1, (1, nhidden), jnp.float32, -scale0, scale0),
        "conv0_w": jax.random.uniform(k2, (nhidden, nhidden), jnp.float32, -scale1, scale1),
        "fc1_w": jax.random.uniform(k3, (nhidden, nclass), jnp.float32, -scale1, scale1),
        "fc1_b": jax.random.uniform(k4, (1, nclass), jnp.float32, -scale1, scale1),
    }


def make_adj(key, nnode):
    # Deterministic random symmetric graph, D^-1/2 (A + I) D^-1/2 normalization.
    a = (jax.random.uniform(key, (nnode, nnode)) < 0.3).astype(jnp.float32)
    a = jnp.maximum(a, a.T)
    a = a + jnp.eye(nnode, dtype=jnp.float32)
    d = jnp.sum(a, axis=1)
    d_inv_sqrt = 1.0 / jnp.sqrt(d)
    return a * d_inv_sqrt[:, None] * d_inv_sqrt[None, :]


if __name__ == "__main__":
    # Small synthetic configuration.
    nnode, nfeat, nhidden, nclass = 16, 16, 32, 8
    nlayers, hop, alpha = 2, 2, 0.1

    key = jax.random.PRNGKey(0)
    kx, ka, kp = jax.random.split(key, 3)

    x = jax.random.normal(kx, (nnode, nfeat), dtype=jnp.float32)
    adj = make_adj(ka, nnode)
    params = init_params(kp, nfeat, nhidden, nclass)

    out = nof_forward(x, adj, params, nlayers=nlayers, alpha=alpha, hop=hop,
                      nclass=nclass)
    out = jax.block_until_ready(out)

    assert out.shape == (nnode, nclass)
    # log_softmax rows should sum (in prob space) to ~1.
    assert jnp.allclose(jnp.sum(jnp.exp(out), axis=1), 1.0, atol=1e-4)

    # Compare against the pure-JAX f32 reference (bf16 MXU inputs => loose tol).
    ref = nof_forward_ref(x, adj, params, nlayers=nlayers, alpha=alpha, hop=hop)
    max_err = float(jnp.max(jnp.abs(out - ref)))
    assert max_err < 5e-2, f"mismatch vs f32 reference: max_err={max_err}"

    print("KERNEL_OK")
</pallas_src>

<mosaic_0001>
module attributes {stable_mosaic.version = 11 : i64} {
  func.func @fused_nof_kernel(%arg0: i32, %arg1: memref<16x16xbf16, #tpu.memory_space<vmem>>, %arg2: memref<16x16xbf16, #tpu.memory_space<vmem>>, %arg3: memref<16x128xbf16, #tpu.memory_space<vmem>>, %arg4: memref<1x128xf32, #tpu.memory_space<vmem>>, %arg5: memref<128x128xbf16, #tpu.memory_space<vmem>>, %arg6: memref<128x128xbf16, #tpu.memory_space<vmem>>, %arg7: memref<1x128xf32, #tpu.memory_space<vmem>>, %arg8: memref<16x128xf32, #tpu.memory_space<vmem>>, %arg9: memref<16x128xf32, #tpu.memory_space<vmem>>, %arg10: memref<16x128xf32, #tpu.memory_space<vmem>>) attributes {dimension_semantics = [#tpu.dimension_semantics<arbitrary>], iteration_bounds = array<i64: 2>, scalar_prefetch = 0 : i64, scratch_operands = 2 : i64, tpu.core_type = #tpu.core_type<tc>, window_params = [{pipeline_mode = #tpu.pipeline_mode<synchronous>, transform_indices = @transform_0, window_bounds = array<i64: 16, 16>}, {pipeline_mode = #tpu.pipeline_mode<synchronous>, transform_indices = @transform_1, window_bounds = array<i64: 16, 16>}, {pipeline_mode = #tpu.pipeline_mode<synchronous>, transform_indices = @transform_2, window_bounds = array<i64: 16, 128>}, {pipeline_mode = #tpu.pipeline_mode<synchronous>, transform_indices = @transform_3, window_bounds = array<i64: 1, 128>}, {pipeline_mode = #tpu.pipeline_mode<synchronous>, transform_indices = @transform_4, window_bounds = array<i64: 128, 128>}, {pipeline_mode = #tpu.pipeline_mode<synchronous>, transform_indices = @transform_5, window_bounds = array<i64: 128, 128>}, {pipeline_mode = #tpu.pipeline_mode<synchronous>, transform_indices = @transform_6, window_bounds = array<i64: 1, 128>}, {pipeline_mode = #tpu.pipeline_mode<synchronous>, transform_indices = @transform_7, window_bounds = array<i64: 16, 128>}]} {
    %c0_i32 = arith.constant 0 : i32
    %0 = arith.cmpi eq, %arg0, %c0_i32 : i32
    %1 = arith.extui %0 : i1 to i32
    %c0_i32_0 = arith.constant 0 : i32
    %2 = arith.cmpi ne, %1, %c0_i32_0 : i32
    scf.if %2 {
      %c0_16 = arith.constant 0 : index
      %c0_17 = arith.constant 0 : index
      %24 = vector.load %arg1[%c0_16, %c0_17] : memref<16x16xbf16, #tpu.memory_space<vmem>>, vector<16x16xbf16>
      %c0_18 = arith.constant 0 : index
      %c0_19 = arith.constant 0 : index
      %25 = vector.load %arg3[%c0_18, %c0_19] : memref<16x128xbf16, #tpu.memory_space<vmem>>, vector<16x128xbf16>
      %cst_20 = arith.constant dense<0.000000e+00> : vector<16x128xf32>
      %26 = tpu.matmul %24, %25, %cst_20 {dimension_numbers = #tpu.dot_dimension_numbers<[1], [0], [0], [1], [0, 0, 1, 1], [], []>} : vector<16x16xbf16>, vector<16x128xbf16>, vector<16x128xf32> -> vector<16x128xf32>
      %c0_21 = arith.constant 0 : index
      %c0_22 = arith.constant 0 : index
      %27 = vector.load %arg4[%c0_21, %c0_22] : memref<1x128xf32, #tpu.memory_space<vmem>>, vector<1x128xf32>
      %28 = vector.broadcast %27 : vector<1x128xf32> to vector<16x128xf32>
      %29 = arith.addf %26, %28 : vector<16x128xf32>
      %cst_23 = arith.constant 0.000000e+00 : f32
      %30 = vector.broadcast %cst_23 : f32 to vector<16x128xf32>
      %31 = arith.maximumf %29, %30 : vector<16x128xf32>
      %c0_24 = arith.constant 0 : index
      %c0_25 = arith.constant 0 : index
      %32 = vector.load %arg10[%c0_24, %c0_25] : memref<16x128xf32, #tpu.memory_space<vmem>>, vector<16x128xf32>
      tpu.vector_store %arg10[%c0_24, %c0_25], %31 {strides = array<i32>} : memref<16x128xf32, #tpu.memory_space<vmem>>, vector<16x128xf32>,
      %c0_26 = arith.constant 0 : index
      %c0_27 = arith.constant 0 : index
      %33 = vector.load %arg9[%c0_26, %c0_27] : memref<16x128xf32, #tpu.memory_space<vmem>>, vector<16x128xf32>
      tpu.vector_store %arg9[%c0_26, %c0_27], %31 {strides = array<i32>} : memref<16x128xf32, #tpu.memory_space<vmem>>, vector<16x128xf32>,
    } else {
    }
    %c0 = arith.constant 0 : index
    %c0_1 = arith.constant 0 : index
    %3 = vector.load %arg2[%c0, %c0_1] : memref<16x16xbf16, #tpu.memory_space<vmem>>, vector<16x16xbf16>
    %c0_2 = arith.constant 0 : index
    %c0_3 = arith.constant 0 : index
    %4 = vector.load %arg9[%c0_2, %c0_3] : memref<16x128xf32, #tpu.memory_space<vmem>>, vector<16x128xf32>
    %5 = arith.truncf %4 : vector<16x128xf32> to vector<16x128xbf16>
    %cst = arith.constant dense<0.000000e+00> : vector<16x128xf32>
    %6 = tpu.matmul %3, %5, %cst {dimension_numbers = #tpu.dot_dimension_numbers<[1], [0], [0], [1], [0, 0, 1, 1], [], []>} : vector<16x16xbf16>, vector<16x128xbf16>, vector<16x128xf32> -> vector<16x128xf32>
    %7 = arith.truncf %6 : vector<16x128xf32> to vector<16x128xbf16>
    %cst_4 = arith.constant dense<0.000000e+00> : vector<16x128xf32>
    %8 = tpu.matmul %3, %7, %cst_4 {dimension_numbers = #tpu.dot_dimension_numbers<[1], [0], [0], [1], [0, 0, 1, 1], [], []>} : vector<16x16xbf16>, vector<16x128xbf16>, vector<16x128xf32> -> vector<16x128xf32>
    %cst_5 = arith.constant 0.899999976 : f32
    %9 = vector.broadcast %cst_5 : f32 to vector<16x128xf32>
    %10 = arith.mulf %9, %8 : vector<16x128xf32>
    %c0_6 = arith.constant 0 : index
    %c0_7 = arith.constant 0 : index
    %11 = vector.load %arg10[%c0_6, %c0_7] : memref<16x128xf32, #tpu.memory_space<vmem>>, vector<16x128xf32>
    %cst_8 = arith.constant 1.000000e-01 : f32
    %12 = vector.broadcast %cst_8 : f32 to vector<16x128xf32>
    %13 = arith.mulf %12, %11 : vector<16x128xf32>
    %14 = arith.addf %10, %13 : vector<16x128xf32>
    %15 = arith.truncf %14 : vector<16x128xf32> to vector<16x128xbf16>
    %c0_9 = arith.constant 0 : index
    %c0_10 = arith.constant 0 : index
    %16 = vector.load %arg5[%c0_9, %c0_10] : memref<128x128xbf16, #tpu.memory_space<vmem>>, vector<128x128xbf16>
    %cst_11 = arith.constant dense<0.000000e+00> : vector<16x128xf32>
    %17 = tpu.matmul %15, %16, %cst_11 {dimension_numbers = #tpu.dot_dimension_numbers<[1], [0], [0], [1], [0, 0, 1, 1], [], []>} : vector<16x128xbf16>, vector<128x128xbf16>, vector<16x128xf32> -> vector<16x128xf32>
    %cst_12 = arith.constant 0.000000e+00 : f32
    %18 = vector.broadcast %cst_12 : f32 to vector<16x128xf32>
    %19 = arith.maximumf %17, %18 : vector<16x128xf32>
    %c0_13 = arith.constant 0 : index
    %c0_14 = arith.constant 0 : index
    %20 = vector.load %arg9[%c0_13, %c0_14] : memref<16x128xf32, #tpu.memory_space<vmem>>, vector<16x128xf32>
    tpu.vector_store %arg9[%c0_13, %c0_14], %19 {strides = array<i32>} : memref<16x128xf32, #tpu.memory_space<vmem>>, vector<16x128xf32>,
    %c1_i32 = arith.constant 1 : i32
    %21 = arith.cmpi eq, %arg0, %c1_i32 : i32
    %22 = arith.extui %21 : i1 to i32
    %c0_i32_15 = arith.constant 0 : i32
    %23 = arith.cmpi ne, %22, %c0_i32_15 : i32
    scf.if %23 {
      %24 = arith.truncf %19 : vector<16x128xf32> to vector<16x128xbf16>
      %c0_16 = arith.constant 0 : index
      %c0_17 = arith.constant 0 : index
      %25 = vector.load %arg6[%c0_16, %c0_17] : memref<128x128xbf16, #tpu.memory_space<vmem>>, vector<128x128xbf16>
      %cst_18 = arith.constant dense<0.000000e+00> : vector<16x128xf32>
      %26 = tpu.matmul %24, %25, %cst_18 {dimension_numbers = #tpu.dot_dimension_numbers<[1], [0], [0], [1], [0, 0, 1, 1], [], []>} : vector<16x128xbf16>, vector<128x128xbf16>, vector<16x128xf32> -> vector<16x128xf32>
      %c0_19 = arith.constant 0 : index
      %c0_20 = arith.constant 0 : index
      %27 = vector.load %arg7[%c0_19, %c0_20] : memref<1x128xf32, #tpu.memory_space<vmem>>, vector<1x128xf32>
      %28 = vector.broadcast %27 : vector<1x128xf32> to vector<16x128xf32>
      %29 = arith.addf %26, %28 : vector<16x128xf32>
      %cst_21 = arith.constant dense<0xFF800000> : vector<16xf32>
      %30 = vector.multi_reduction <maximumf>, %29, %cst_21 [1] : vector<16x128xf32> to vector<16xf32>
      %31 = vector.shape_cast %30 : vector<16xf32> to vector<16x1xf32>
      %32 = vector.broadcast %31 : vector<16x1xf32> to vector<16x128xf32>
      %33 = arith.subf %29, %32 : vector<16x128xf32>
      %34 = math.exp %33 : vector<16x128xf32>
      %cst_22 = arith.constant dense<0.000000e+00> : vector<16xf32>
      %35 = vector.multi_reduction <add>, %34, %cst_22 [1] : vector<16x128xf32> to vector<16xf32>
      %36 = vector.shape_cast %35 : vector<16xf32> to vector<16x1xf32>
      %37 = math.log %36 : vector<16x1xf32>
      %38 = vector.broadcast %37 : vector<16x1xf32> to vector<16x128xf32>
      %39 = arith.subf %33, %38 : vector<16x128xf32>
      %c0_23 = arith.constant 0 : index
      %c0_24 = arith.constant 0 : index
      %40 = vector.load %arg8[%c0_23, %c0_24] : memref<16x128xf32, #tpu.memory_space<vmem>>, vector<16x128xf32>
      tpu.vector_store %arg8[%c0_23, %c0_24], %39 {strides = array<i32>} : memref<16x128xf32, #tpu.memory_space<vmem>>, vector<16x128xf32>,
    } else {
    }
    return
  }
  func.func @transform_0(%arg0: i32) -> (i32, i32) {
    %c0_i32 = arith.constant 0 : i32
    %c0_i32_0 = arith.constant 0 : i32
    %c0_i32_1 = arith.constant 0 : i32
    return %c0_i32, %c0_i32_0 : i32, i32
  }
  func.func @transform_1(%arg0: i32) -> (i32, i32) {
    %c0_i32 = arith.constant 0 : i32
    %c0_i32_0 = arith.constant 0 : i32
    %c0_i32_1 = arith.constant 0 : i32
    return %c0_i32, %c0_i32_0 : i32, i32
  }
  func.func @transform_2(%arg0: i32) -> (i32, i32) {
    %c0_i32 = arith.constant 0 : i32
    %c0_i32_0 = arith.constant 0 : i32
    %c0_i32_1 = arith.constant 0 : i32
    return %c0_i32, %c0_i32_0 : i32, i32
  }
  func.func @transform_3(%arg0: i32) -> (i32, i32) {
    %c0_i32 = arith.constant 0 : i32
    %c0_i32_0 = arith.constant 0 : i32
    %c0_i32_1 = arith.constant 0 : i32
    return %c0_i32, %c0_i32_0 : i32, i32
  }
  func.func @transform_4(%arg0: i32) -> (i32, i32) {
    %c0_i32 = arith.constant 0 : i32
    %c0_i32_0 = arith.constant 0 : i32
    %c0_i32_1 = arith.constant 0 : i32
    return %c0_i32, %c0_i32_0 : i32, i32
  }
  func.func @transform_5(%arg0: i32) -> (i32, i32) {
    %c0_i32 = arith.constant 0 : i32
    %c0_i32_0 = arith.constant 0 : i32
    %c0_i32_1 = arith.constant 0 : i32
    return %c0_i32, %c0_i32_0 : i32, i32
  }
  func.func @transform_6(%arg0: i32) -> (i32, i32) {
    %c0_i32 = arith.constant 0 : i32
    %c0_i32_0 = arith.constant 0 : i32
    %c0_i32_1 = arith.constant 0 : i32
    return %c0_i32, %c0_i32_0 : i32, i32
  }
  func.func @transform_7(%arg0: i32) -> (i32, i32) {
    %c0_i32 = arith.constant 0 : i32
    %c0_i32_0 = arith.constant 0 : i32
    %c0_i32_1 = arith.constant 0 : i32
    return %c0_i32, %c0_i32_0 : i32, i32
  }
}

</mosaic_0001>

<llo_original>
// kernel: tpu_custom_call.1
$region0: #{tpu_custom_call.1}
  #allocation0 [shape = 'u32[]', space=smem, size = 0x4, offset = 0x4, fixed_abs, tag = 'smem constant byte address 0x4 - core index']
  #allocation1 [shape = 'u32[144,128]{1,0:T(1,128)}', space=vmem, size = 0x12000, scoped, tag = 'internal scratch']
  #allocation2 [shape = 'f32[16,128]{1,0:T(8,128)}', space=vmem, size = 0x2000, scoped, tag = 'scratch operand']
  #allocation3 [shape = 'f32[16,128]{1,0:T(8,128)}', space=vmem, size = 0x2000, scoped, tag = 'scratch operand']
  %s0 = inlined_call_operand.hbm [shape: bf16[16,16], index: 0, kind: input, shape index: {}]
  %s1 = inlined_call_operand.hbm [shape: bf16[16,16], index: 1, kind: input, shape index: {}]
  %s2 = inlined_call_operand.hbm [shape: bf16[16,128], index: 2, kind: input, shape index: {}]
  %s3 = inlined_call_operand.vmem [shape: f32[1,128], index: 3, kind: input, shape index: {}]
  %s4 = inlined_call_operand.hbm [shape: bf16[128,128], index: 4, kind: input, shape index: {}]
  %s5 = inlined_call_operand.hbm [shape: bf16[128,128], index: 5, kind: input, shape index: {}]
  %s6 = inlined_call_operand.vmem [shape: f32[1,128], index: 6, kind: input, shape index: {}]
  %s7 = inlined_call_operand.hbm [shape: f32[16,128], index: 7, kind: output, shape index: {}]
  %s8 = sld [smem:[#allocation0]]
  $region89: #{tpu_custom_call.1} parent=0
    _
  %s10 = ssub.s32 1, %s8
  %s11 = scalar_select 0, %s10, %s8
  $region1: #{tpu_custom_call.1} parent=0
    #allocation4 [shape = 'u8[4096]{0}', space=vmem, size = 0x1000, scoped, tag = 'input window, operand 0, single buffered']
    #allocation5 [shape = 's32[2]{0}', space=sflag, size = 0x8, scoped, tag = 'scoped memory for tpu_custom_call.1']
    #allocation6 [shape = 's32[2]{0}', space=sflag, size = 0x8, scoped, tag = 'scoped memory for tpu_custom_call.1']
    #allocation7 [shape = 'u8[4096]{0}', space=vmem, size = 0x1000, scoped, tag = 'input window, operand 1, single buffered']
    #allocation8 [shape = 's32[1]{0}', space=sflag, size = 0x4, scoped, tag = 'scoped memory for tpu_custom_call.1']
    #allocation9 [shape = 'u8[4096]{0}', space=vmem, size = 0x1000, scoped, tag = 'input window, operand 2, single buffered']
    #allocation10 [shape = 'u8[32768]{0}', space=vmem, size = 0x8000, scoped, tag = 'input window, operand 4, single buffered']
    #allocation11 [shape = 's32[1]{0}', space=sflag, size = 0x4, scoped, tag = 'scoped memory for tpu_custom_call.1']
    #allocation12 [shape = 'u8[32768]{0}', space=vmem, size = 0x8000, scoped, tag = 'input window, operand 5, single buffered']
    #allocation13 [shape = 'u8[8192]{0}', space=vmem, size = 0x2000, scoped, tag = 'output window, operand 0, single buffered']
    %12 = vsyncpa [#allocation5], 0
    %13 = vsyncpa [#allocation8], 0
    %14 = vsyncpa [#allocation11], 0
    %15 = vsyncpa [#allocation6], 0
    loop: start=0, step=1, limit=4
    $region2: #{tpu_custom_call.1} parent=1 // loop_pre_header
      _
    $region3: #{tpu_custom_call.1} parent=1 // loop_header
      %s17 = sphi 0, %s21
      %p18 = scmp.ge.s32.totalorder %s17, 4
      %s25 = sphi 0, %s25
      %s27 = sphi 0, %s25
      %s28 = sphi 0, %s27
      %s42 = sphi 0, %s28
      %s46 = sphi 0, %s46
      %s48 = sphi 0, %s46
      %s49 = sphi 0, %s48
      %s63 = sphi 0, %s49
      %s67 = sphi 0, %s67
      %s69 = sphi 0, %s67
      %s70 = sphi 0, %s69
      %s84 = sphi 0, %s70
      %s88 = sphi 0, %s88
      %s90 = sphi 0, %s88
      %s91 = sphi 0, %s90
      %s105 = sphi 0, %s91
      %s109 = sphi 0, %s109
      %s111 = sphi 0, %s109
      %s112 = sphi 0, %s111
      %s126 = sphi 0, %s112
      %s130 = sphi 0, %s130
      %s132 = sphi 0, %s130
      %s133 = sphi 0, %s132
      %s147 = sphi 0, %s133
      %s151 = sphi 0, %s151
      %s153 = sphi 0, %s151
      %s154 = sphi 0, %s153
      %s168 = sphi 0, %s154
      %s172 = sphi 0, %s172
      %s174 = sphi 0, %s172
      %s175 = sphi 0, %s174
      %s189 = sphi 0, %s175
    $region4: #{tpu_custom_call.1} parent=1 // loop_header_branch
      %20 = sbr.rel (%p18) target = $region8
    $region5: #{tpu_custom_call.1} parent=1 // loop_body
      %s22 = ssub.s32 %s17, 1
      %s23 = ssub.s32 %s17, 2
      %s24 = sadd.s32 %s17, 1
      %s26 = sadd.s32 %s25, 1
      %p29 = scmp.eq.s32.totalorder %s17, 1
      %p30 = scmp.ne.s32.totalorder %s25, %s27
      %p31 = scmp.eq.s32.totalorder %s17, 0
      %p32 = por %p30, %p31
      %p33 = scmp.ne.s32.totalorder %s25, %s27
      %p34 = scmp.eq.s32.totalorder %s22, 1
      %p35 = por %p33, %p34
      %p36 = scmp.ne.s32.totalorder %s27, %s28
      %p37 = scmp.eq.s32.totalorder %s22, 0
      %p38 = por %p36, %p37
      %p39 = scmp.ne.s32.totalorder %s27, %s28
      %p40 = scmp.eq.s32.totalorder %s23, 1
      %p41 = por %p39, %p40
      %p43 = scmp.ne.s32.totalorder %s28, %s42
      %p44 = scmp.eq.s32.totalorder %s23, 0
      %p45 = por %p43, %p44
      %s47 = sadd.s32 %s46, 1
      %p50 = scmp.eq.s32.totalorder %s17, 1
      %p51 = scmp.ne.s32.totalorder %s46, %s48
      %p52 = scmp.eq.s32.totalorder %s17, 0
      %p53 = por %p51, %p52
      %p54 = scmp.ne.s32.totalorder %s46, %s48
      %p55 = scmp.eq.s32.totalorder %s22, 1
      %p56 = por %p54, %p55
      %p57 = scmp.ne.s32.totalorder %s48, %s49
      %p58 = scmp.eq.s32.totalorder %s22, 0
      %p59 = por %p57, %p58
      %p60 = scmp.ne.s32.totalorder %s48, %s49
      %p61 = scmp.eq.s32.totalorder %s23, 1
      %p62 = por %p60, %p61
      %p64 = scmp.ne.s32.totalorder %s49, %s63
      %p65 = scmp.eq.s32.totalorder %s23, 0
      %p66 = por %p64, %p65
      %s68 = sadd.s32 %s67, 1
      %p71 = scmp.eq.s32.totalorder %s17, 1
      %p72 = scmp.ne.s32.totalorder %s67, %s69
      %p73 = scmp.eq.s32.totalorder %s17, 0
      %p74 = por %p72, %p73
      %p75 = scmp.ne.s32.totalorder %s67, %s69
      %p76 = scmp.eq.s32.totalorder %s22, 1
      %p77 = por %p75, %p76
      %p78 = scmp.ne.s32.totalorder %s69, %s70
      %p79 = scmp.eq.s32.totalorder %s22, 0
      %p80 = por %p78, %p79
      %p81 = scmp.ne.s32.totalorder %s69, %s70
      %p82 = scmp.eq.s32.totalorder %s23, 1
      %p83 = por %p81, %p82
      %p85 = scmp.ne.s32.totalorder %s70, %s84
      %p86 = scmp.eq.s32.totalorder %s23, 0
      %p87 = por %p85, %p86
      %s89 = sadd.s32 %s88, 1
      %p92 = scmp.eq.s32.totalorder %s17, 1
      %p93 = scmp.ne.s32.totalorder %s88, %s90
      %p94 = scmp.eq.s32.totalorder %s17, 0
      %p95 = por %p93, %p94
      %p96 = scmp.ne.s32.totalorder %s88, %s90
      %p97 = scmp.eq.s32.totalorder %s22, 1
      %p98 = por %p96, %p97
      %p99 = scmp.ne.s32.totalorder %s90, %s91
      %p100 = scmp.eq.s32.totalorder %s22, 0
      %p101 = por %p99, %p100
      %p102 = scmp.ne.s32.totalorder %s90, %s91
      %p103 = scmp.eq.s32.totalorder %s23, 1
      %p104 = por %p102, %p103
      %p106 = scmp.ne.s32.totalorder %s91, %s105
      %p107 = scmp.eq.s32.totalorder %s23, 0
      %p108 = por %p106, %p107
      %s110 = sadd.s32 %s109, 1
      %p113 = scmp.eq.s32.totalorder %s17, 1
      %p114 = scmp.ne.s32.totalorder %s109, %s111
      %p115 = scmp.eq.s32.totalorder %s17, 0
      %p116 = por %p114, %p115
      %p117 = scmp.ne.s32.totalorder %s109, %s111
      %p118 = scmp.eq.s32.totalorder %s22, 1
      %p119 = por %p117, %p118
      %p120 = scmp.ne.s32.totalorder %s111, %s112
      %p121 = scmp.eq.s32.totalorder %s22, 0
      %p122 = por %p120, %p121
      %p123 = scmp.ne.s32.totalorder %s111, %s112
      %p124 = scmp.eq.s32.totalorder %s23, 1
      %p125 = por %p123, %p124
      %p127 = scmp.ne.s32.totalorder %s112, %s126
      %p128 = scmp.eq.s32.totalorder %s23, 0
      %p129 = por %p127, %p128
      %s131 = sadd.s32 %s130, 1
      %p134 = scmp.eq.s32.totalorder %s17, 1
      %p135 = scmp.ne.s32.totalorder %s130, %s132
      %p136 = scmp.eq.s32.totalorder %s17, 0
      %p137 = por %p135, %p136
      %p138 = scmp.ne.s32.totalorder %s130, %s132
      %p139 = scmp.eq.s32.totalorder %s22, 1
      %p140 = por %p138, %p139
      %p141 = scmp.ne.s32.totalorder %s132, %s133
      %p142 = scmp.eq.s32.totalorder %s22, 0
      %p143 = por %p141, %p142
      %p144 = scmp.ne.s32.totalorder %s132, %s133
      %p145 = scmp.eq.s32.totalorder %s23, 1
      %p146 = por %p144, %p145
      %p148 = scmp.ne.s32.totalorder %s133, %s147
      %p149 = scmp.eq.s32.totalorder %s23, 0
      %p150 = por %p148, %p149
      %s152 = sadd.s32 %s151, 1
      %p155 = scmp.eq.s32.totalorder %s17, 1
      %p156 = scmp.ne.s32.totalorder %s151, %s153
      %p157 = scmp.eq.s32.totalorder %s17, 0
      %p158 = por %p156, %p157
      %p159 = scmp.ne.s32.totalorder %s151, %s153
      %p160 = scmp.eq.s32.totalorder %s22, 1
      %p161 = por %p159, %p160
      %p162 = scmp.ne.s32.totalorder %s153, %s154
      %p163 = scmp.eq.s32.totalorder %s22, 0
      %p164 = por %p162, %p163
      %p165 = scmp.ne.s32.totalorder %s153, %s154
      %p166 = scmp.eq.s32.totalorder %s23, 1
      %p167 = por %p165, %p166
      %p169 = scmp.ne.s32.totalorder %s154, %s168
      %p170 = scmp.eq.s32.totalorder %s23, 0
      %p171 = por %p169, %p170
      %s173 = sadd.s32 %s172, 1
      %p176 = scmp.eq.s32.totalorder %s17, 1
      %p177 = scmp.ne.s32.totalorder %s172, %s174
      %p178 = scmp.eq.s32.totalorder %s17, 0
      %p179 = por %p177, %p178
      %p180 = scmp.ne.s32.totalorder %s172, %s174
      %p181 = scmp.eq.s32.totalorder %s22, 1
      %p182 = por %p180, %p181
      %p183 = scmp.ne.s32.totalorder %s174, %s175
      %p184 = scmp.eq.s32.totalorder %s22, 0
      %p185 = por %p183, %p184
      %p186 = scmp.ne.s32.totalorder %s174, %s175
      %p187 = scmp.eq.s32.totalorder %s23, 1
      %p188 = por %p186, %p187
      %p190 = scmp.ne.s32.totalorder %s175, %s189
      %p191 = scmp.eq.s32.totalorder %s23, 0
      %p192 = por %p190, %p191
      %p193 = scmp.le.s32.totalorder 1, %s17
      %p194 = scmp.lt.s32.totalorder %s17, 3
      %p195 = pnand %p193, %p194
      %p196 = pneg %p195
      // Predicated region
      $region9: #{tpu_custom_call.1} parent=5 // pred_check
        _
      $region10: #{tpu_custom_call.1} parent=5 // pred_check_branch
        %198 = sbr.rel (%p195) target = $region12
      $region11: #{tpu_custom_call.1} parent=5 // pred_region
        %s199 = ssub.s32 %s17, 1
        // Predicated region
        $region13: #{tpu_custom_call.1} parent=11 // pred_check
          %p200 = pneg %p38
        $region14: #{tpu_custom_call.1} parent=11 // pred_check_branch
          %202 = sbr.rel (%p200) target = $region16
        $region15: #{tpu_custom_call.1} parent=11 // pred_region
          %s204 = ssub.s32 128, 128
          %205 = vsyncadd [#allocation5], %s204
          %s206 = sshll.u32 [#allocation4], 4
          %s207 = int_to_ptr.vmem [resolvable:$true] %s206
          %212 = dma.hbm_to_vmem [thread:$0]  %s0, 128, %s207, [#allocation5], 64, 64, 4
        $region16: #{tpu_custom_call.1} parent=11 // pred_fallthru
          _
        // Predicated region
        $region17: #{tpu_custom_call.1} parent=11 // pred_check
          %p213 = pneg %p59
        $region18: #{tpu_custom_call.1} parent=11 // pred_check_branch
          %215 = sbr.rel (%p213) target = $region20
        $region19: #{tpu_custom_call.1} parent=11 // pred_region
          %s217 = ssub.s32 128, 128
          %218 = vsyncadd [#allocation8], %s217
          %s219 = sshll.u32 [#allocation7], 4
          %s220 = int_to_ptr.vmem [resolvable:$true] %s219
          %225 = dma.hbm_to_vmem [thread:$0]  %s1, 128, %s220, [#allocation8], 64, 64, 4
        $region20: #{tpu_custom_call.1} parent=11 // pred_fallthru
          _
        // Predicated region
        $region21: #{tpu_custom_call.1} parent=11 // pred_check
          %p226 = pneg %p80
        $region22: #{tpu_custom_call.1} parent=11 // pred_check_branch
          %228 = sbr.rel (%p226) target = $region24
        $region23: #{tpu_custom_call.1} parent=11 // pred_region
          %s230 = ssub.s32 128, 128
          %231 = vsyncadd [#allocation8], %s230
          %s232 = sshll.u32 [#allocation9], 4
          %s233 = int_to_ptr.vmem [resolvable:$true] %s232
          %238 = dma.hbm_to_vmem [thread:$0]  %s2, 128, %s233, [#allocation8], 64, 64, 4
        $region24: #{tpu_custom_call.1} parent=11 // pred_fallthru
          _
        // Predicated region
        $region25: #{tpu_custom_call.1} parent=11 // pred_check
          %p239 = pneg %p101
        $region26: #{tpu_custom_call.1} parent=11 // pred_check_branch
          %241 = sbr.rel (%p239) target = $region28
        $region27: #{tpu_custom_call.1} parent=11 // pred_region
          _
        $region28: #{tpu_custom_call.1} parent=11 // pred_fallthru
          _
        // Predicated region
        $region29: #{tpu_custom_call.1} parent=11 // pred_check
          %p242 = pneg %p122
        $region30: #{tpu_custom_call.1} parent=11 // pred_check_branch
          %244 = sbr.rel (%p242) target = $region32
        $region31: #{tpu_custom_call.1} parent=11 // pred_region
          %s246 = ssub.s32 1024, 1024
          %247 = vsyncadd [#allocation11], %s246
          %s248 = sshll.u32 [#allocation10], 4
          %s249 = int_to_ptr.vmem [resolvable:$true] %s248
          %254 = dma.hbm_to_vmem [thread:$0]  %s4, 1024, %s249, [#allocation11], 64, 64, 4
        $region32: #{tpu_custom_call.1} parent=11 // pred_fallthru
          _
        // Predicated region
        $region33: #{tpu_custom_call.1} parent=11 // pred_check
          %p255 = pneg %p143
        $region34: #{tpu_custom_call.1} parent=11 // pred_check_branch
          %257 = sbr.rel (%p255) target = $region36
        $region35: #{tpu_custom_call.1} parent=11 // pred_region
          %s259 = ssub.s32 1024, 1024
          %260 = vsyncadd [#allocation11], %s259
          %s261 = sshll.u32 [#allocation12], 4
          %s262 = int_to_ptr.vmem [resolvable:$true] %s261
          %267 = dma.hbm_to_vmem [thread:$0]  %s5, 1024, %s262, [#allocation11], 64, 64, 4
        $region36: #{tpu_custom_call.1} parent=11 // pred_fallthru
          _
        // Predicated region
        $region37: #{tpu_custom_call.1} parent=11 // pred_check
          %p268 = pneg %p164
        $region38: #{tpu_custom_call.1} parent=11 // pred_check_branch
          %270 = sbr.rel (%p268) target = $region40
        $region39: #{tpu_custom_call.1} parent=11 // pred_region
          _
        $region40: #{tpu_custom_call.1} parent=11 // pred_fallthru
          _
      $region12: #{tpu_custom_call.1} parent=5 // pred_fallthru
        _
      %p271 = scmp.lt.s32.totalorder %s17, 2
      // Predicated region
      $region41: #{tpu_custom_call.1} parent=5 // pred_check
        %p272 = pneg %p271
      $region42: #{tpu_custom_call.1} parent=5 // pred_check_branch
        %274 = sbr.rel (%p272) target = $region44
      $region43: #{tpu_custom_call.1} parent=5 // pred_region
        _
      $region44: #{tpu_custom_call.1} parent=5 // pred_fallthru
        _
      %p275 = scmp.le.s32.totalorder 1, %s17
      %p276 = scmp.lt.s32.totalorder %s17, 3
      %p277 = pnand %p275, %p276
      %p278 = pneg %p277
      // Predicated region
      $region45: #{tpu_custom_call.1} parent=5 // pred_check
        _
      $region46: #{tpu_custom_call.1} parent=5 // pred_check_branch
        %280 = sbr.rel (%p277) target = $region48
      $region47: #{tpu_custom_call.1} parent=5 // pred_region
        %s281 = ssub.s32 %s17, 1
        // Predicated region
        $region49: #{tpu_custom_call.1} parent=47 // pred_check
          %p282 = pneg %p38
        $region50: #{tpu_custom_call.1} parent=47 // pred_check_branch
          %284 = sbr.rel (%p282) target = $region52
        $region51: #{tpu_custom_call.1} parent=47 // pred_region
          %285 = dma.done [#allocation5], 128
        $region52: #{tpu_custom_call.1} parent=47 // pred_fallthru
          _
        // Predicated region
        $region53: #{tpu_custom_call.1} parent=47 // pred_check
          %p286 = pneg %p59
        $region54: #{tpu_custom_call.1} parent=47 // pred_check_branch
          %288 = sbr.rel (%p286) target = $region56
        $region55: #{tpu_custom_call.1} parent=47 // pred_region
          %289 = dma.done [#allocation8], 128
        $region56: #{tpu_custom_call.1} parent=47 // pred_fallthru
          _
        // Predicated region
        $region57: #{tpu_custom_call.1} parent=47 // pred_check
          %p290 = pneg %p80
        $region58: #{tpu_custom_call.1} parent=47 // pred_check_branch
          %292 = sbr.rel (%p290) target = $region60
        $region59: #{tpu_custom_call.1} parent=47 // pred_region
          %293 = dma.done [#allocation8], 128
        $region60: #{tpu_custom_call.1} parent=47 // pred_fallthru
          _
        // Predicated region
        $region61: #{tpu_custom_call.1} parent=47 // pred_check
          %p294 = pneg %p122
        $region62: #{tpu_custom_call.1} parent=47 // pred_check_branch
          %296 = sbr.rel (%p294) target = $region64
        $region63: #{tpu_custom_call.1} parent=47 // pred_region
          %297 = dma.done [#allocation11], 1024
        $region64: #{tpu_custom_call.1} parent=47 // pred_fallthru
          _
        // Predicated region
        $region65: #{tpu_custom_call.1} parent=47 // pred_check
          %p298 = pneg %p143
        $region66: #{tpu_custom_call.1} parent=47 // pred_check_branch
          %300 = sbr.rel (%p298) target = $region68
        $region67: #{tpu_custom_call.1} parent=47 // pred_region
          %301 = dma.done [#allocation11], 1024
        $region68: #{tpu_custom_call.1} parent=47 // pred_fallthru
          _
        %p302 = pneg %p38
        %p303 = pneg %p35
        %p304 = pneg %p59
        %p305 = pneg %p56
        %p306 = pneg %p80
        %p307 = pneg %p77
        %p308 = pneg %p101
        %p309 = pneg %p98
        %p310 = pneg %p122
        %p311 = pneg %p119
        %p312 = pneg %p143
        %p313 = pneg %p140
        %p314 = pneg %p164
        %p315 = pneg %p161
        %p316 = pneg %p185
        %p317 = pneg %p182
        %p319 = scmp.eq.s32.totalorder %s22, 0
        // Predicated region
        $region69: #{tpu_custom_call.1} parent=47 // pred_check
          %p320 = pneg %p319
        $region70: #{tpu_custom_call.1} parent=47 // pred_check_branch
          %322 = sbr.rel (%p320) target = $region72
        $region71: #{tpu_custom_call.1} parent=47 // pred_region
          %v323 = vld [vmem:[#allocation4] sm:$0xf]
          %v324 = vld [vmem:[#allocation4 + $0x4] sm:$0xf]
          %v325 = vld [vmem:[#allocation9] sm:$0xf]
          %v326 = vld [vmem:[#allocation9 + $0x4] sm:$0xf]
          %v327 = vld [vmem:[%s3] sm:$0x1]
          %v329 = vlaneseq
          %v330 = vshrl.u32 %v329, 7
          %v331 = vsub.s32 0, %v330
          %v332 = vrot.slane %v327, %v331
          %v336 = vunpack.c.l.b16 %v323
          %v337 = vunpack.c.l.b16 %v324
          %v338 = vpack.c.b16 %v337, %v336
          %v341 = vunpack.c.l.b16 %v325
          %v342 = vunpack.c.l.b16 %v326
          %v343 = vpack.c.b16 %v342, %v341
          %vm345 = vcmask 130048
          %v347 = vsel %vm345, %v338, 0
          %349 = vmatprep.subr.bf16.mxu0 0
          %350 = vmatpush1.bf16.msra.mxu0 0
          %351 = vmatprep.subr.bf16.mxu0 0
          %352 = vmatpush1.bf16.msra.mxu0 0
          %353 = vmatprep.subr.bf16.mxu0 0
          %354 = vmatpush1.bf16.msra.mxu0 0
          %355 = vmatprep.subr.bf16.mxu0 0
          %356 = vmatpush1.bf16.msra.mxu0 0
          %357 = vmatprep.subr.bf16.mxu0 0
          %358 = vmatpush1.bf16.msra.mxu0 0
          %359 = vmatprep.subr.bf16.mxu0 0
          %360 = vmatpush1.bf16.msra.mxu0 0
          %361 = vmatprep.subr.bf16.mxu0 0
          %362 = vmatpush1.bf16.msra.mxu0 0
          %363 = vmatprep.subr.bf16.mxu0 0
          %364 = vmatpush1.bf16.msra.mxu0 %v343
          %365 = vmatprep.subr.bf16.mxu0 0
          %366 = vmatpush2.bf16.msra.mxu0 0
          %367 = vmatprep.subr.bf16.mxu0 0
          %368 = vmatpush2.bf16.msra.mxu0 0
          %369 = vmatprep.subr.bf16.mxu0 0
          %370 = vmatpush2.bf16.msra.mxu0 0
          %371 = vmatprep.subr.bf16.mxu0 0
          %372 = vmatpush2.bf16.msra.mxu0 0
          %373 = vmatprep.subr.bf16.mxu0 0
          %374 = vmatpush2.bf16.msra.mxu0 0
          %375 = vmatprep.subr.bf16.mxu0 0
          %376 = vmatpush2.bf16.msra.mxu0 0
          %377 = vmatprep.subr.bf16.mxu0 0
          %378 = vmatpush2.bf16.msra.mxu0 0
          %379 = vmatprep.subr.bf16.mxu0 0
          %380 = vmatpush2.bf16.msra.mxu0 0
          %381 = vmatprep.mubr.bf16.mxu0 0
          %382 = vmatmul.mubr.bf16.gmra.mxu0 %v347
          %v383 = vpop.f32.mrf.mxu0
          %v384 = vadd.f32 %v332, %v383
          %v385 = vpop.f32.mrf.mxu0
          %v386 = vpop.f32.mrf.mxu0
          %v387 = vadd.f32 %v332, %v386
          %v388 = vpop.f32.mrf.mxu0
          %389 = vdwg.mxu0
          %v390 = vmax.f32 %v384, 0.0
          %v391 = vmax.f32 %v387, 0.0
          %392 = vst [vmem:[#allocation3] sm:$0xff] %v390
          %393 = vst [vmem:[#allocation3 + $0x8] sm:$0xff] %v391
          %394 = vst [vmem:[#allocation2] sm:$0xff] %v390
          %395 = vst [vmem:[#allocation2 + $0x8] sm:$0xff] %v391
        $region72: #{tpu_custom_call.1} parent=47 // pred_fallthru
          _
        %v396 = vld [vmem:[#allocation7] sm:$0xf]
        %v397 = vld [vmem:[#allocation7 + $0x4] sm:$0xf]
        %v398 = vld [vmem:[#allocation2] sm:$0xff]
        %v399 = vld [vmem:[#allocation2 + $0x8] sm:$0xff]
        %v400 = vpack.c.bf16 %v399, %v398
        %v403 = vunpack.c.l.b16 %v396
        %v404 = vunpack.c.l.b16 %v397
        %v405 = vpack.c.b16 %v404, %v403
        %vm406 = vcmask 130048
        %v408 = vsel %vm406, %v405, 0
        %410 = vmatprep.subr.bf16.mxu0 0
        %411 = vmatpush1.bf16.msra.mxu0 0
        %412 = vmatprep.subr.bf16.mxu0 0
        %413 = vmatpush1.bf16.msra.mxu0 0
        %414 = vmatprep.subr.bf16.mxu0 0
        %415 = vmatpush1.bf16.msra.mxu0 0
        %416 = vmatprep.subr.bf16.mxu0 0
        %417 = vmatpush1.bf16.msra.mxu0 0
        %418 = vmatprep.subr.bf16.mxu0 0
        %419 = vmatpush1.bf16.msra.mxu0 0
        %420 = vmatprep.subr.bf16.mxu0 0
        %421 = vmatpush1.bf16.msra.mxu0 0
        %422 = vmatprep.subr.bf16.mxu0 0
        %423 = vmatpush1.bf16.msra.mxu0 0
        %424 = vmatprep.subr.bf16.mxu0 0
        %425 = vmatpush1.bf16.msra.mxu0 %v400
        %426 = vmatprep.subr.bf16.mxu0 0
        %427 = vmatpush2.bf16.msra.mxu0 0
        %428 = vmatprep.subr.bf16.mxu0 0
        %429 = vmatpush2.bf16.msra.mxu0 0
        %430 = vmatprep.subr.bf16.mxu0 0
        %431 = vmatpush2.bf16.msra.mxu0 0
        %432 = vmatprep.subr.bf16.mxu0 0
        %433 = vmatpush2.bf16.msra.mxu0 0
        %434 = vmatprep.subr.bf16.mxu0 0
        %435 = vmatpush2.bf16.msra.mxu0 0
        %436 = vmatprep.subr.bf16.mxu0 0
        %437 = vmatpush2.bf16.msra.mxu0 0
        %438 = vmatprep.subr.bf16.mxu0 0
        %439 = vmatpush2.bf16.msra.mxu0 0
        %440 = vmatprep.subr.bf16.mxu0 0
        %441 = vmatpush2.bf16.msra.mxu0 0
        %442 = vmatprep.mubr.bf16.mxu0 0
        %443 = vmatmul.mubr.bf16.gmra.mxu0 %v408
        %v444 = vpop.f32.mrf.mxu0
        %v445 = vadd.f32 0.0, %v444
        %v446 = vpop.f32.mrf.mxu0
        %v447 = vpop.f32.mrf.mxu0
        %v448 = vadd.f32 0.0, %v447
        %v449 = vpop.f32.mrf.mxu0
        %450 = vdwg.mxu0
        %v451 = vpack.c.bf16 %v448, %v445
        %452 = vmatprep.subr.bf16.mxu0 0
        %453 = vmatpush1.bf16.msra.mxu0 0
        %454 = vmatprep.subr.bf16.mxu0 0
        %455 = vmatpush1.bf16.msra.mxu0 0
        %456 = vmatprep.subr.bf16.mxu0 0
        %457 = vmatpush1.bf16.msra.mxu0 0
        %458 = vmatprep.subr.bf16.mxu0 0
        %459 = vmatpush1.bf16.msra.mxu0 0
        %460 = vmatprep.subr.bf16.mxu0 0
        %461 = vmatpush1.bf16.msra.mxu0 0
        %462 = vmatprep.subr.bf16.mxu0 0
        %463 = vmatpush1.bf16.msra.mxu0 0
        %464 = vmatprep.subr.bf16.mxu0 0
        %465 = vmatpush1.bf16.msra.mxu0 0
        %466 = vmatprep.subr.bf16.mxu0 0
        %467 = vmatpush1.bf16.msra.mxu0 %v451
        %468 = vmatprep.subr.bf16.mxu0 0
        %469 = vmatpush2.bf16.msra.mxu0 0
        %470 = vmatprep.subr.bf16.mxu0 0
        %471 = vmatpush2.bf16.msra.mxu0 0
        %472 = vmatprep.subr.bf16.mxu0 0
        %473 = vmatpush2.bf16.msra.mxu0 0
        %474 = vmatprep.subr.bf16.mxu0 0
        %475 = vmatpush2.bf16.msra.mxu0 0
        %476 = vmatprep.subr.bf16.mxu0 0
        %477 = vmatpush2.bf16.msra.mxu0 0
        %478 = vmatprep.subr.bf16.mxu0 0
        %479 = vmatpush2.bf16.msra.mxu0 0
        %480 = vmatprep.subr.bf16.mxu0 0
        %481 = vmatpush2.bf16.msra.mxu0 0
        %482 = vmatprep.subr.bf16.mxu0 0
        %483 = vmatpush2.bf16.msra.mxu0 0
        %484 = vmatprep.mubr.bf16.mxu0 0
        %485 = vmatmul.mubr.bf16.gmra.mxu0 %v408
        %v486 = vpop.f32.mrf.mxu0
        %v487 = vadd.f32 0.0, %v486
        %v488 = vpop.f32.mrf.mxu0
        %v489 = vpop.f32.mrf.mxu0
        %v490 = vadd.f32 0.0, %v489
        %v491 = vpop.f32.mrf.mxu0
        %492 = vdwg.mxu0
        %v493 = vmul.f32 %v487, 0.9
        %v494 = vmul.f32 %v490, 0.9
        %v495 = vld [vmem:[#allocation3] sm:$0xff]
        %v496 = vld [vmem:[#allocation3 + $0x8] sm:$0xff]
        %v497 = vmul.f32 %v495, 0.1
        %v498 = vmul.f32 %v496, 0.1
        %v499 = vadd.f32 %v493, %v497
        %v500 = vadd.f32 %v494, %v498
        %v501 = vpack.c.bf16 %v500, %v499
        %v502 = vld [vmem:[#allocation10] sm:$0xf]
        %v503 = vld [vmem:[#allocation10 + $0x4] sm:$0xf]
        %v504 = vld [vmem:[#allocation10 + $0x8] sm:$0xf]
        %v505 = vld [vmem:[#allocation10 + $0xc] sm:$0xf]
        %v506 = vld [vmem:[#allocation10 + $0x10] sm:$0xf]
        %v507 = vld [vmem:[#allocation10 + $0x14] sm:$0xf]
        %v508 = vld [vmem:[#allocation10 + $0x18] sm:$0xf]
        %v509 = vld [vmem:[#allocation10 + $0x1c] sm:$0xf]
        %v510 = vld [vmem:[#allocation10 + $0x20] sm:$0xf]
        %v511 = vld [vmem:[#allocation10 + $0x24] sm:$0xf]
        %v512 = vld [vmem:[#allocation10 + $0x28] sm:$0xf]
        %v513 = vld [vmem:[#allocation10 + $0x2c] sm:$0xf]
        %v514 = vld [vmem:[#allocation10 + $0x30] sm:$0xf]
        %v515 = vld [vmem:[#allocation10 + $0x34] sm:$0xf]
        %v516 = vld [vmem:[#allocation10 + $0x38] sm:$0xf]
        %v517 = vld [vmem:[#allocation10 + $0x3c] sm:$0xf]
        %v534 = vunpack.c.l.b16 %v502
        %v535 = vunpack.c.l.b16 %v503
        %v536 = vunpack.c.l.b16 %v504
        %v537 = vunpack.c.l.b16 %v505
        %v538 = vunpack.c.l.b16 %v506
        %v539 = vunpack.c.l.b16 %v507
        %v540 = vunpack.c.l.b16 %v508
        %v541 = vunpack.c.l.b16 %v509
        %v542 = vunpack.c.l.b16 %v510
        %v543 = vunpack.c.l.b16 %v511
        %v544 = vunpack.c.l.b16 %v512
        %v545 = vunpack.c.l.b16 %v513
        %v546 = vunpack.c.l.b16 %v514
        %v547 = vunpack.c.l.b16 %v515
        %v548 = vunpack.c.l.b16 %v516
        %v549 = vunpack.c.l.b16 %v517
        %v550 = vpack.c.b16 %v535, %v534
        %v551 = vpack.c.b16 %v537, %v536
        %v552 = vpack.c.b16 %v539, %v538
        %v553 = vpack.c.b16 %v541, %v540
        %v554 = vpack.c.b16 %v543, %v542
        %v555 = vpack.c.b16 %v545, %v544
        %v556 = vpack.c.b16 %v547, %v546
        %v557 = vpack.c.b16 %v549, %v548
        %566 = vmatprep.subr.bf16.mxu0 0
        %567 = vmatpush1.bf16.msra.mxu0 %v557
        %568 = vmatprep.subr.bf16.mxu0 0
        %569 = vmatpush1.bf16.msra.mxu0 %v556
        %570 = vmatprep.subr.bf16.mxu0 0
        %571 = vmatpush1.bf16.msra.mxu0 %v555
        %572 = vmatprep.subr.bf16.mxu0 0
        %573 = vmatpush1.bf16.msra.mxu0 %v554
        %574 = vmatprep.subr.bf16.mxu0 0
        %575 = vmatpush1.bf16.msra.mxu0 %v553
        %576 = vmatprep.subr.bf16.mxu0 0
        %577 = vmatpush1.bf16.msra.mxu0 %v552
        %578 = vmatprep.subr.bf16.mxu0 0
        %579 = vmatpush1.bf16.msra.mxu0 %v551
        %580 = vmatprep.subr.bf16.mxu0 0
        %581 = vmatpush1.bf16.msra.mxu0 %v550
        %582 = vmatprep.subr.bf16.mxu0 0
        %583 = vmatpush2.bf16.msra.mxu0 0
        %584 = vmatprep.subr.bf16.mxu0 0
        %585 = vmatpush2.bf16.msra.mxu0 0
        %586 = vmatprep.subr.bf16.mxu0 0
        %587 = vmatpush2.bf16.msra.mxu0 0
        %588 = vmatprep.subr.bf16.mxu0 0
        %589 = vmatpush2.bf16.msra.mxu0 0
        %590 = vmatprep.subr.bf16.mxu0 0
        %591 = vmatpush2.bf16.msra.mxu0 0
        %592 = vmatprep.subr.bf16.mxu0 0
        %593 = vmatpush2.bf16.msra.mxu0 0
        %594 = vmatprep.subr.bf16.mxu0 0
        %595 = vmatpush2.bf16.msra.mxu0 0
        %596 = vmatprep.subr.bf16.mxu0 0
        %597 = vmatpush2.bf16.msra.mxu0 0
        %598 = vmatprep.mubr.bf16.mxu0 0
        %599 = vmatmul.mubr.bf16.gmra.mxu0 %v501
        %v600 = vpop.f32.mrf.mxu0
        %v601 = vadd.f32 0.0, %v600
        %v602 = vpop.f32.mrf.mxu0
        %v603 = vpop.f32.mrf.mxu0
        %v604 = vadd.f32 0.0, %v603
        %v605 = vpop.f32.mrf.mxu0
        %606 = vdwg.mxu0
        %v607 = vmax.f32 %v601, 0.0
        %v608 = vmax.f32 %v604, 0.0
        %609 = vst [vmem:[#allocation2] sm:$0xff] %v607
        %610 = vst [vmem:[#allocation2 + $0x8] sm:$0xff] %v608
        %p611 = scmp.eq.s32.totalorder %s22, 1
        // Predicated region
        $region73: #{tpu_custom_call.1} parent=47 // pred_check
          %p612 = pneg %p611
        $region74: #{tpu_custom_call.1} parent=47 // pred_check_branch
          %614 = sbr.rel (%p612) target = $region76
        $region75: #{tpu_custom_call.1} parent=47 // pred_region
          %v615 = vpack.c.bf16 %v608, %v607
          %v616 = vld [vmem:[#allocation12] sm:$0xf]
          %v617 = vld [vmem:[#allocation12 + $0x4] sm:$0xf]
          %v618 = vld [vmem:[#allocation12 + $0x8] sm:$0xf]
          %v619 = vld [vmem:[#allocation12 + $0xc] sm:$0xf]
          %v620 = vld [vmem:[#allocation12 + $0x10] sm:$0xf]
          %v621 = vld [vmem:[#allocation12 + $0x14] sm:$0xf]
          %v622 = vld [vmem:[#allocation12 + $0x18] sm:$0xf]
          %v623 = vld [vmem:[#allocation12 + $0x1c] sm:$0xf]
          %v624 = vld [vmem:[#allocation12 + $0x20] sm:$0xf]
          %v625 = vld [vmem:[#allocation12 + $0x24] sm:$0xf]
          %v626 = vld [vmem:[#allocation12 + $0x28] sm:$0xf]
          %v627 = vld [vmem:[#allocation12 + $0x2c] sm:$0xf]
          %v628 = vld [vmem:[#allocation12 + $0x30] sm:$0xf]
          %v629 = vld [vmem:[#allocation12 + $0x34] sm:$0xf]
          %v630 = vld [vmem:[#allocation12 + $0x38] sm:$0xf]
          %v631 = vld [vmem:[#allocation12 + $0x3c] sm:$0xf]
          %v632 = vld [vmem:[%s6] sm:$0x1]
          %v634 = vlaneseq
          %v635 = vshrl.u32 %v634, 7
          %v636 = vsub.s32 0, %v635
          %v637 = vrot.slane %v632, %v636
          %v655 = vunpack.c.l.b16 %v616
          %v656 = vunpack.c.l.b16 %v617
          %v657 = vunpack.c.l.b16 %v618
          %v658 = vunpack.c.l.b16 %v619
          %v659 = vunpack.c.l.b16 %v620
          %v660 = vunpack.c.l.b16 %v621
          %v661 = vunpack.c.l.b16 %v622
          %v662 = vunpack.c.l.b16 %v623
          %v663 = vunpack.c.l.b16 %v624
          %v664 = vunpack.c.l.b16 %v625
          %v665 = vunpack.c.l.b16 %v626
          %v666 = vunpack.c.l.b16 %v627
          %v667 = vunpack.c.l.b16 %v628
          %v668 = vunpack.c.l.b16 %v629
          %v669 = vunpack.c.l.b16 %v630
          %v670 = vunpack.c.l.b16 %v631
          %v671 = vpack.c.b16 %v656, %v655
          %v672 = vpack.c.b16 %v658, %v657
          %v673 = vpack.c.b16 %v660, %v659
          %v674 = vpack.c.b16 %v662, %v661
          %v675 = vpack.c.b16 %v664, %v663
          %v676 = vpack.c.b16 %v666, %v665
          %v677 = vpack.c.b16 %v668, %v667
          %v678 = vpack.c.b16 %v670, %v669
          %687 = vmatprep.subr.bf16.mxu0 0
          %688 = vmatpush1.bf16.msra.mxu0 %v678
          %689 = vmatprep.subr.bf16.mxu0 0
          %690 = vmatpush1.bf16.msra.mxu0 %v677
          %691 = vmatprep.subr.bf16.mxu0 0
          %692 = vmatpush1.bf16.msra.mxu0 %v676
          %693 = vmatprep.subr.bf16.mxu0 0
          %694 = vmatpush1.bf16.msra.mxu0 %v675
          %695 = vmatprep.subr.bf16.mxu0 0
          %696 = vmatpush1.bf16.msra.mxu0 %v674
          %697 = vmatprep.subr.bf16.mxu0 0
          %698 = vmatpush1.bf16.msra.mxu0 %v673
          %699 = vmatprep.subr.bf16.mxu0 0
          %700 = vmatpush1.bf16.msra.mxu0 %v672
          %701 = vmatprep.subr.bf16.mxu0 0
          %702 = vmatpush1.bf16.msra.mxu0 %v671
          %703 = vmatprep.subr.bf16.mxu0 0
          %704 = vmatpush2.bf16.msra.mxu0 0
          %705 = vmatprep.subr.bf16.mxu0 0
          %706 = vmatpush2.bf16.msra.mxu0 0
          %707 = vmatprep.subr.bf16.mxu0 0
          %708 = vmatpush2.bf16.msra.mxu0 0
          %709 = vmatprep.subr.bf16.mxu0 0
          %710 = vmatpush2.bf16.msra.mxu0 0
          %711 = vmatprep.subr.bf16.mxu0 0
          %712 = vmatpush2.bf16.msra.mxu0 0
          %713 = vmatprep.subr.bf16.mxu0 0
          %714 = vmatpush2.bf16.msra.mxu0 0
          %715 = vmatprep.subr.bf16.mxu0 0
          %716 = vmatpush2.bf16.msra.mxu0 0
          %717 = vmatprep.subr.bf16.mxu0 0
          %718 = vmatpush2.bf16.msra.mxu0 0
          %719 = vmatprep.mubr.bf16.mxu0 0
          %720 = vmatmul.mubr.bf16.gmra.mxu0 %v615
          %v721 = vpop.f32.mrf.mxu0
          %v722 = vadd.f32 %v637, %v721
          %v723 = vpop.f32.mrf.mxu0
          %v724 = vpop.f32.mrf.mxu0
          %v725 = vadd.f32 %v637, %v724
          %v726 = vpop.f32.mrf.mxu0
          %727 = vdwg.mxu0
          %728 = vmax.xlane.f32.xlu0 %v722
          %v729 = vpop.xlane.xlu0 %728
          %730 = vmax.xlane.f32.xlu0 %v725
          %v731 = vpop.xlane.xlu0 %730
          %v732 = vsub.f32 %v722, %v729
          %v733 = vsub.f32 %v725, %v731
          %v734 = vmul.f32 %v732, 1.442695
          %v735 = vpow.pop %v734
          %v736 = vmul.f32 %v733, 1.442695
          %v737 = vpow.pop %v736
          %738 = vadd.xlane.f32.xlu0 %v735
          %v739 = vpop.xlane.xlu0 %738
          %740 = vadd.xlane.f32.xlu0 %v737
          %v741 = vpop.xlane.xlu0 %740
          %v742 = vlog2.pop %v739
          %v743 = vmul.f32 %v742, 0.6931472
          %v744 = vlog2.pop %v741
          %v745 = vmul.f32 %v744, 0.6931472
          %v746 = vsub.f32 %v732, %v743
          %v747 = vsub.f32 %v733, %v745
          %748 = vst [vmem:[#allocation13] sm:$0xff] %v746
          %749 = vst [vmem:[#allocation13 + $0x8] sm:$0xff] %v747
        $region76: #{tpu_custom_call.1} parent=47 // pred_fallthru
          _
        // Predicated region
        $region77: #{tpu_custom_call.1} parent=47 // pred_check
          %p750 = pneg %p182
        $region78: #{tpu_custom_call.1} parent=47 // pred_check_branch
          %752 = sbr.rel (%p750) target = $region80
        $region79: #{tpu_custom_call.1} parent=47 // pred_region
          %s754 = ssub.s32 256, 256
          %755 = vsyncadd [#allocation6], %s754
          %s756 = sshll.u32 [#allocation13], 4
          %s757 = int_to_ptr.vmem [resolvable:$true] %s756
          %762 = dma.vmem_to_hbm [thread:$0]  %s757, 256, %s7, [#allocation6], 128, 128, 8
        $region80: #{tpu_custom_call.1} parent=47 // pred_fallthru
          _
        // Predicated region
        $region81: #{tpu_custom_call.1} parent=47 // pred_check
          %p763 = pneg %p182
        $region82: #{tpu_custom_call.1} parent=47 // pred_check_branch
          %765 = sbr.rel (%p763) target = $region84
        $region83: #{tpu_custom_call.1} parent=47 // pred_region
          %766 = dma.done [#allocation6], 256
        $region84: #{tpu_custom_call.1} parent=47 // pred_fallthru
          _
      $region48: #{tpu_custom_call.1} parent=5 // pred_fallthru
        _
      %p767 = scmp.le.s32.totalorder 2, %s17
      // Predicated region
      $region85: #{tpu_custom_call.1} parent=5 // pred_check
        %p768 = pneg %p767
      $region86: #{tpu_custom_call.1} parent=5 // pred_check_branch
        %770 = sbr.rel (%p768) target = $region88
      $region87: #{tpu_custom_call.1} parent=5 // pred_region
        %s771 = ssub.s32 %s17, 2
      $region88: #{tpu_custom_call.1} parent=5 // pred_fallthru
        _
    $region6: #{tpu_custom_call.1} parent=1 // loop_footer
      %s21 = sadd.s32 1, %s17
    $region7: #{tpu_custom_call.1} parent=1 // loop_footer_branch
      %16 = sbr.rel target = $region3
    $region8: #{tpu_custom_call.1} parent=1 // loop_exit
      _
    %772 = vsyncpa [#allocation5], 1
    %s773 = scalar_lea.sflag [#allocation5], 1
    %774 = vsyncpa %s773, 1
    %775 = vsyncpa [#allocation8], 1
    %776 = vsyncpa [#allocation11], 1
    %777 = vsyncpa [#allocation6], 1
    %s778 = scalar_lea.sflag [#allocation6], 1
    %779 = vsyncpa %s778, 1

</llo_original>
